<compile_context>
chip_gen: v5e
topology: v5e:2x2
jax: 0.10.0
libtpu: 0.0.40
codegen_flags: <defaults>
</compile_context>

<pallas_src>
import functools

import jax
import jax.numpy as jnp
from jax.experimental import pallas as pl
from jax.experimental.pallas import tpu as pltpu

# Hyperparameters from AsymmetricLoss3.__init__ defaults.
# NOTE: the kernel hardcodes gamma_pos == 1 and gamma_neg == 4 via repeated
# squaring (integer powers); change the focusing-weight code if these change.
GAMMA_NEG = 4.0
GAMMA_POS = 1.0
CLIP = 0.05
EPS = 1e-6


def _asl3_kernel(x_ref, y_ref, out_ref, acc_ref):
    i = pl.program_id(0)

    @pl.when(i == 0)
    def _():
        acc_ref[...] = jnp.zeros_like(acc_ref)

    x = x_ref[...].astype(jnp.float32)
    y = y_ref[...].astype(jnp.float32)

    # NOTE: this variant swaps pos/neg probabilities relative to the usual ASL:
    #   xs_neg = sigmoid(x), xs_pos = 1 - sigmoid(x)
    sig = jax.nn.sigmoid(x)                      # EUP transcendental #1
    xs_pos = 1.0 - sig
    xs_neg = jnp.minimum(sig + CLIP, 1.0)        # clip (probability shifting)

    is_pos = y > 0.0
    # For binary y:  los_pos + los_neg == log(max(p_sel, eps)),  pt == p_sel.
    p_sel = jnp.where(is_pos, xs_pos, xs_neg)
    log_p = jnp.log(jnp.maximum(p_sel, EPS))     # EUP transcendental #2

    # Asymmetric focusing weight:
    #   y == 1 -> (1-pt)^gamma_pos = (1-pt)^1
    #   y == 0 -> (1-pt)^gamma_neg = (1-pt)^4  (two VPU squarings, no pow)
    one_minus_pt = 1.0 - p_sel
    sq = one_minus_pt * one_minus_pt
    w = jnp.where(is_pos, one_minus_pt, sq * sq)

    # Accumulate elementwise into the VMEM vector accumulator (VPU only);
    # the full cross-lane reduction is paid once, on the last grid step.
    acc_ref[...] += log_p * w

    @pl.when(i == pl.num_programs(0) - 1)
    def _():
        out_ref[0] = -jnp.sum(acc_ref[...])


def _round_up(a, b):
    return (a + b - 1) // b * b


def asymmetric_loss3(x, y, *, row_tile=512, vmem_budget_bytes=12 * 1024 * 1024):
    """Computes -sum(loss) exactly as AsymmetricLoss3.forward (binary targets).

    x: (N, C) logits, y: (N, C) binarized targets. Returns a float32 scalar.
    Rows are tiled with large blocks to amortize per-step pipeline overhead;
    the tile row count is capped so 2 inputs x 2 pipeline buffers + 1 f32
    accumulator stay well inside the scoped-VMEM budget (safe on v5e/v6e/v7x).
    """
    N, C = x.shape

    # Tile sizing: ~5 f32 (row_tile, C) tiles live in VMEM at once.
    bytes_per_row = C * 4
    max_rows = max(8, ((vmem_budget_bytes // 5) // bytes_per_row) // 8 * 8)
    rt = int(min(row_tile, max_rows, _round_up(N, 8)))
    rt = max(8, rt - (rt % 8))

    n_pad = _round_up(N, rt)
    if n_pad != N:
        # Padding rows contribute exactly zero: a large positive logit with
        # target 0 gives xs_neg clipped to 1 -> log(1) = 0 and weight (1-1)^4 = 0.
        x = jnp.pad(x, ((0, n_pad - N), (0, 0)), constant_values=50.0)
        y = jnp.pad(y, ((0, n_pad - N), (0, 0)), constant_values=0.0)

    grid = (n_pad // rt,)

    # TODO(synk): for v7x dual-TensorCore, restructure to per-block partial
    # sums with a "parallel" row axis and a final jnp.sum in the wrapper.
    out = pl.pallas_call(
        _asl3_kernel,
        out_shape=jax.ShapeDtypeStruct((1,), jnp.float32),
        grid_spec=pltpu.PrefetchScalarGridSpec(
            num_scalar_prefetch=0,
            grid=grid,
            in_specs=[
                pl.BlockSpec((rt, C), lambda i: (i, 0)),
                pl.BlockSpec((rt, C), lambda i: (i, 0)),
            ],
            out_specs=pl.BlockSpec(memory_space=pltpu.MemorySpace.SMEM),
            scratch_shapes=[pltpu.VMEM((rt, C), jnp.float32)],
        ),
        compiler_params=pltpu.CompilerParams(
            dimension_semantics=("arbitrary",),  # sequential accumulation
        ),
    )(x, y)
    return out[0]


def asymmetric_loss3_ref(x, y):
    """Pure-JAX reference mirroring the PyTorch forward pass (general y)."""
    x = x.astype(jnp.float32)
    y = y.astype(jnp.float32)
    x_sigmoid = jax.nn.sigmoid(x)
    xs_neg = x_sigmoid
    xs_pos = 1.0 - x_sigmoid
    xs_neg = jnp.minimum(xs_neg + CLIP, 1.0)
    los_pos = y * jnp.log(jnp.maximum(xs_pos, EPS))
    los_neg = (1.0 - y) * jnp.log(jnp.maximum(xs_neg, EPS))
    loss = los_pos + los_neg
    pt = xs_pos * y + xs_neg * (1.0 - y)
    gamma = GAMMA_POS * y + GAMMA_NEG * (1.0 - y)
    loss = loss * jnp.power(1.0 - pt, gamma)
    return -jnp.sum(loss)


if __name__ == "__main__":
    key = jax.random.PRNGKey(0)
    kx, ky = jax.random.split(key)

    N, C = 16, 128  # batch=16, num_classes=128
    x = jax.random.normal(kx, (N, C), dtype=jnp.float32) * 2.0
    y = (jax.random.uniform(ky, (N, C)) < 0.3).astype(jnp.float32)

    out = asymmetric_loss3(x, y)
    out = jax.block_until_ready(out)

    ref = asymmetric_loss3_ref(x, y)
    assert jnp.allclose(out, ref, rtol=2e-4, atol=1e-2), (out, ref)

    print("KERNEL_OK")
</pallas_src>

<mosaic_0001>
module attributes {stable_mosaic.version = 11 : i64} {
  func.func @_asl3_kernel(%arg0: i32, %arg1: memref<16x128xf32, #tpu.memory_space<vmem>>, %arg2: memref<16x128xf32, #tpu.memory_space<vmem>>, %arg3: memref<1xf32, #tpu.memory_space<smem>>, %arg4: memref<16x128xf32, #tpu.memory_space<vmem>>) attributes {dimension_semantics = [#tpu.dimension_semantics<arbitrary>], iteration_bounds = array<i64: 1>, scalar_prefetch = 0 : i64, scratch_operands = 1 : i64, tpu.core_type = #tpu.core_type<tc>, window_params = [{transform_indices = @transform_0, window_bounds = array<i64: 16, 128>}, {transform_indices = @transform_1, window_bounds = array<i64: 16, 128>}, {transform_indices = @transform_2, window_bounds = array<i64: 1>}]} {
    %c0_i32 = arith.constant 0 : i32
    %0 = arith.cmpi eq, %arg0, %c0_i32 : i32
    %1 = arith.extui %0 : i1 to i32
    %c0_i32_0 = arith.constant 0 : i32
    %2 = arith.cmpi ne, %1, %c0_i32_0 : i32
    scf.if %2 {
      %cst_16 = arith.constant 0.000000e+00 : f32
      %34 = vector.broadcast %cst_16 : f32 to vector<16x128xf32>
      %c0_17 = arith.constant 0 : index
      %c0_18 = arith.constant 0 : index
      %35 = vector.load %arg4[%c0_17, %c0_18] : memref<16x128xf32, #tpu.memory_space<vmem>>, vector<16x128xf32>
      tpu.vector_store %arg4[%c0_17, %c0_18], %34 {strides = array<i32>} : memref<16x128xf32, #tpu.memory_space<vmem>>, vector<16x128xf32>,
    } else {
    }
    %c0 = arith.constant 0 : index
    %c0_1 = arith.constant 0 : index
    %3 = vector.load %arg1[%c0, %c0_1] : memref<16x128xf32, #tpu.memory_space<vmem>>, vector<16x128xf32>
    %c0_2 = arith.constant 0 : index
    %c0_3 = arith.constant 0 : index
    %4 = vector.load %arg2[%c0_2, %c0_3] : memref<16x128xf32, #tpu.memory_space<vmem>>, vector<16x128xf32>
    %5 = arith.negf %3 : vector<16x128xf32>
    %6 = math.exp %5 : vector<16x128xf32>
    %cst = arith.constant 1.000000e+00 : f32
    %7 = vector.broadcast %cst : f32 to vector<16x128xf32>
    %8 = arith.addf %7, %6 : vector<16x128xf32>
    %9 = arith.divf %7, %8 : vector<16x128xf32>
    %cst_4 = arith.constant 1.000000e+00 : f32
    %10 = vector.broadcast %cst_4 : f32 to vector<16x128xf32>
    %11 = arith.subf %10, %9 : vector<16x128xf32>
    %cst_5 = arith.constant 5.000000e-02 : f32
    %12 = vector.broadcast %cst_5 : f32 to vector<16x128xf32>
    %13 = arith.addf %9, %12 : vector<16x128xf32>
    %cst_6 = arith.constant 1.000000e+00 : f32
    %14 = vector.broadcast %cst_6 : f32 to vector<16x128xf32>
    %15 = arith.minimumf %13, %14 : vector<16x128xf32>
    %cst_7 = arith.constant 0.000000e+00 : f32
    %16 = vector.broadcast %cst_7 : f32 to vector<16x128xf32>
    %17 = arith.cmpf ogt, %4, %16 : vector<16x128xf32>
    %18 = arith.select %17, %11, %15 : vector<16x128xi1>, vector<16x128xf32>
    %cst_8 = arith.constant 9.99999997E-7 : f32
    %19 = vector.broadcast %cst_8 : f32 to vector<16x128xf32>
    %20 = arith.maximumf %18, %19 : vector<16x128xf32>
    %21 = math.log %20 : vector<16x128xf32>
    %cst_9 = arith.constant 1.000000e+00 : f32
    %22 = vector.broadcast %cst_9 : f32 to vector<16x128xf32>
    %23 = arith.subf %22, %18 : vector<16x128xf32>
    %24 = arith.mulf %23, %23 : vector<16x128xf32>
    %25 = arith.mulf %24, %24 : vector<16x128xf32>
    %26 = arith.select %17, %23, %25 : vector<16x128xi1>, vector<16x128xf32>
    %c0_10 = arith.constant 0 : index
    %c0_11 = arith.constant 0 : index
    %27 = vector.load %arg4[%c0_10, %c0_11] : memref<16x128xf32, #tpu.memory_space<vmem>>, vector<16x128xf32>
    %28 = arith.mulf %21, %26 : vector<16x128xf32>
    %29 = arith.addf %27, %28 : vector<16x128xf32>
    %c0_12 = arith.constant 0 : index
    %c0_13 = arith.constant 0 : index
    %30 = vector.load %arg4[%c0_12, %c0_13] : memref<16x128xf32, #tpu.memory_space<vmem>>, vector<16x128xf32>
    tpu.vector_store %arg4[%c0_12, %c0_13], %29 {strides = array<i32>} : memref<16x128xf32, #tpu.memory_space<vmem>>, vector<16x128xf32>,
    %c0_i32_14 = arith.constant 0 : i32
    %31 = arith.cmpi eq, %arg0, %c0_i32_14 : i32
    %32 = arith.extui %31 : i1 to i32
    %c0_i32_15 = arith.constant 0 : i32
    %33 = arith.cmpi ne, %32, %c0_i32_15 : i32
    scf.if %33 {
      %c0_16 = arith.constant 0 : index
      %c0_17 = arith.constant 0 : index
      %34 = vector.load %arg4[%c0_16, %c0_17] : memref<16x128xf32, #tpu.memory_space<vmem>>, vector<16x128xf32>
      %35 = vector.shape_cast %34 : vector<16x128xf32> to vector<1x16x128xf32>
      %cst_18 = arith.constant dense<0.000000e+00> : vector<1xf32>
      %36 = vector.multi_reduction <add>, %35, %cst_18 [1, 2] : vector<1x16x128xf32> to vector<1xf32>
      %37 = vector.shape_cast %36 : vector<1xf32> to vector<1x1x1xf32>
      %38 = vector.extract %37[0, 0, 0] : f32 from vector<1x1x1xf32>
      %cst_19 = arith.constant 0.000000e+00 : f32
      %39 = arith.subf %cst_19, %38 : f32
      %c0_20 = arith.constant 0 : index
      %40 = memref.load %arg3[%c0_20] : memref<1xf32, #tpu.memory_space<smem>>
      memref.store %39, %arg3[%c0_20] : memref<1xf32, #tpu.memory_space<smem>>
    } else {
    }
    return
  }
  func.func @transform_0(%arg0: i32) -> (i32, i32) {
    %c0_i32 = arith.constant 0 : i32
    %c0_i32_0 = arith.constant 0 : i32
    return %arg0, %c0_i32 : i32, i32
  }
  func.func @transform_1(%arg0: i32) -> (i32, i32) {
    %c0_i32 = arith.constant 0 : i32
    %c0_i32_0 = arith.constant 0 : i32
    return %arg0, %c0_i32 : i32, i32
  }
  func.func @transform_2(%arg0: i32) -> i32 {
    %c0_i32 = arith.constant 0 : i32
    %c0_i32_0 = arith.constant 0 : i32
    return %c0_i32 : i32
  }
}

</mosaic_0001>

<llo_original>
// kernel: tpu_custom_call.1
$region0: #{tpu_custom_call.1}
  #allocation0 [shape = 'u32[]', space=smem, size = 0x4, offset = 0x4, fixed_abs, tag = 'smem constant byte address 0x4 - core index']
  #allocation1 [shape = 'u32[72,128]{1,0:T(1,128)}', space=vmem, size = 0x9000, scoped, tag = 'internal scratch']
  #allocation2 [shape = 'f32[16,128]{1,0:T(8,128)}', space=vmem, size = 0x2000, scoped, tag = 'scratch operand']
  %s0 = inlined_call_operand.hbm [shape: f32[16,128], index: 0, kind: input, shape index: {}]
  %s1 = inlined_call_operand.hbm [shape: f32[16,128], index: 1, kind: input, shape index: {}]
  %s2 = inlined_call_operand.hbm [shape: f32[1], index: 2, kind: output, shape index: {}]
  %s3 = sld [smem:[#allocation0]]
  $region34: #{tpu_custom_call.1} parent=0
    _
  %s5 = ssub.s32 1, %s3
  %s6 = scalar_select 0, %s5, %s3
  $region1: #{tpu_custom_call.1} parent=0
    #allocation3 [shape = 'u8[8192]{0}', space=vmem, size = 0x2000, scoped, tag = 'input window, operand 0, single buffered']
    #allocation4 [shape = 's32[1]{0}', space=sflag, size = 0x4, scoped, tag = 'scoped memory for tpu_custom_call.1']
    #allocation5 [shape = 's32[1]{0}', space=sflag, size = 0x4, scoped, tag = 'scoped memory for tpu_custom_call.1']
    #allocation6 [shape = 'u8[8192]{0}', space=vmem, size = 0x2000, scoped, tag = 'input window, operand 1, single buffered']
    #allocation7 [shape = 's32[1]{0}', space=sflag, size = 0x4, scoped, tag = 'scoped memory for tpu_custom_call.1']
    #allocation8 [shape = 'u8[512]{0}', space=smem, size = 0x200, scoped, tag = 'output window, operand 0, single buffered']
    %7 = vsyncpa [#allocation4], 0
    %8 = vsyncpa [#allocation7], 0
    %9 = vsyncpa [#allocation5], 0
    // Predicated region
    $region2: #{tpu_custom_call.1} parent=1 // pred_check
      _
    $region3: #{tpu_custom_call.1} parent=1 // pred_check_branch
      %11 = sbr.rel (0) target = $region5
    $region4: #{tpu_custom_call.1} parent=1 // pred_region
      %13 = vsyncadd [#allocation4], 0
      %s14 = sshll.u32 %s0, 4
      %s15 = int_to_ptr.hbm [resolvable:$true] %s14
      %s16 = sshll.u32 [#allocation3], 4
      %s17 = int_to_ptr.vmem [resolvable:$true] %s16
      %22 = dma.hbm_to_vmem [thread:$0]  %s15, 256, %s17, [#allocation4], 128, 128, 8
    $region5: #{tpu_custom_call.1} parent=1 // pred_fallthru
      _
    // Predicated region
    $region6: #{tpu_custom_call.1} parent=1 // pred_check
      _
    $region7: #{tpu_custom_call.1} parent=1 // pred_check_branch
      %24 = sbr.rel (0) target = $region9
    $region8: #{tpu_custom_call.1} parent=1 // pred_region
      %26 = vsyncadd [#allocation7], 0
      %s27 = sshll.u32 %s1, 4
      %s28 = int_to_ptr.hbm [resolvable:$true] %s27
      %s29 = sshll.u32 [#allocation6], 4
      %s30 = int_to_ptr.vmem [resolvable:$true] %s29
      %35 = dma.hbm_to_vmem [thread:$0]  %s28, 256, %s30, [#allocation7], 128, 128, 8
    $region9: #{tpu_custom_call.1} parent=1 // pred_fallthru
      _
    // Predicated region
    $region10: #{tpu_custom_call.1} parent=1 // pred_check
      _
    $region11: #{tpu_custom_call.1} parent=1 // pred_check_branch
      %37 = sbr.rel (0) target = $region13
    $region12: #{tpu_custom_call.1} parent=1 // pred_region
      %39 = dma.done [#allocation4], 256
    $region13: #{tpu_custom_call.1} parent=1 // pred_fallthru
      _
    // Predicated region
    $region14: #{tpu_custom_call.1} parent=1 // pred_check
      _
    $region15: #{tpu_custom_call.1} parent=1 // pred_check_branch
      %41 = sbr.rel (0) target = $region17
    $region16: #{tpu_custom_call.1} parent=1 // pred_region
      %43 = dma.done [#allocation7], 256
    $region17: #{tpu_custom_call.1} parent=1 // pred_fallthru
      _
    %p44 = scmp.eq.s32.totalorder 0, 0
    // Predicated region
    $region18: #{tpu_custom_call.1} parent=1 // pred_check
      %p45 = pneg %p44
    $region19: #{tpu_custom_call.1} parent=1 // pred_check_branch
      %47 = sbr.rel (%p45) target = $region21
    $region20: #{tpu_custom_call.1} parent=1 // pred_region
      %48 = vst [vmem:[#allocation2] sm:$0xff] 0.0
      %49 = vst [vmem:[#allocation2 + $0x8] sm:$0xff] 0.0
    $region21: #{tpu_custom_call.1} parent=1 // pred_fallthru
      _
    %v50 = vld [vmem:[#allocation3] sm:$0xff]
    %v51 = vld [vmem:[#allocation3 + $0x8] sm:$0xff]
    %v52 = vld [vmem:[#allocation6] sm:$0xff]
    %v53 = vld [vmem:[#allocation6 + $0x8] sm:$0xff]
    %v54 = vxor.u32 %v50, 2147483648
    %v55 = vxor.u32 %v51, 2147483648
    %v56 = vmul.f32 %v54, 1.442695
    %v57 = vpow.pop %v56
    %v58 = vmul.f32 %v55, 1.442695
    %v59 = vpow.pop %v58
    %v60 = vadd.f32 %v57, 1.0
    %v61 = vadd.f32 %v59, 1.0
    %v62 = vrcp.pop %v60
    %v63 = vmul.f32 %v60, %v62
    %v64 = vsub.f32 1.0, %v63
    %v65 = vmul.f32 %v62, %v64
    %v66 = vadd.f32 %v62, %v65
    %vm67 = vweird.f32 %v60
    %vm68 = vweird.f32 %v62
    %vm69 = vmor %vm67, %vm68
    %v70 = vsel %vm69, %v62, %v66
    %v71 = vand.u32 2147483647, %v60
    %vm72 = vcmp.eq.f32.partialorder %v71, 8.507059e+37
    %v73 = vand.u32 %v60, 2147483648
    %v74 = vor.u32 1.1754944e-38, %v73
    %v75 = vsel %vm72, %v74, %v70
    %v76 = vmul.f32 1.0, %v75
    %v77 = vrcp.pop %v61
    %v78 = vmul.f32 %v61, %v77
    %v79 = vsub.f32 1.0, %v78
    %v80 = vmul.f32 %v77, %v79
    %v81 = vadd.f32 %v77, %v80
    %vm82 = vweird.f32 %v61
    %vm83 = vweird.f32 %v77
    %vm84 = vmor %vm82, %vm83
    %v85 = vsel %vm84, %v77, %v81
    %v86 = vand.u32 2147483647, %v61
    %vm87 = vcmp.eq.f32.partialorder %v86, 8.507059e+37
    %v88 = vand.u32 %v61, 2147483648
    %v89 = vor.u32 1.1754944e-38, %v88
    %v90 = vsel %vm87, %v89, %v85
    %v91 = vmul.f32 1.0, %v90
    %v92 = vsub.f32 1.0, %v76
    %v93 = vsub.f32 1.0, %v91
    %v94 = vadd.f32 %v76, 0.05
    %v95 = vadd.f32 %v91, 0.05
    %v96 = vmin.f32 %v94, 1.0
    %v97 = vmin.f32 %v95, 1.0
    %vm98 = vcmp.gt.f32.partialorder %v52, 0.0
    %vm99 = vcmp.gt.f32.partialorder %v53, 0.0
    %v100 = vsel %vm98, %v92, %v96
    %v101 = vsel %vm99, %v93, %v97
    %v102 = vmax.f32 %v100, 1e-06
    %v103 = vmax.f32 %v101, 1e-06
    %v104 = vlog2.pop %v102
    %v105 = vmul.f32 %v104, 0.6931472
    %v106 = vlog2.pop %v103
    %v107 = vmul.f32 %v106, 0.6931472
    %v108 = vsub.f32 1.0, %v100
    %v109 = vsub.f32 1.0, %v101
    %v110 = vmul.f32 %v108, %v108
    %v111 = vmul.f32 %v109, %v109
    %v112 = vmul.f32 %v110, %v110
    %v113 = vmul.f32 %v111, %v111
    %v114 = vsel %vm98, %v108, %v112
    %v115 = vsel %vm99, %v109, %v113
    %v116 = vld [vmem:[#allocation2] sm:$0xff]
    %v117 = vld [vmem:[#allocation2 + $0x8] sm:$0xff]
    %v118 = vmul.f32 %v105, %v114
    %v119 = vmul.f32 %v107, %v115
    %v120 = vadd.f32 %v116, %v118
    %v121 = vadd.f32 %v117, %v119
    %122 = vst [vmem:[#allocation2] sm:$0xff] %v120
    %123 = vst [vmem:[#allocation2 + $0x8] sm:$0xff] %v121
    // Predicated region
    $region22: #{tpu_custom_call.1} parent=1 // pred_check
      %p124 = pneg %p44
    $region23: #{tpu_custom_call.1} parent=1 // pred_check_branch
      %126 = sbr.rel (%p124) target = $region25
    $region24: #{tpu_custom_call.1} parent=1 // pred_region
      %v127 = vld [vmem:[#allocation2] sm:$0xff]
      %v128 = vld [vmem:[#allocation2 + $0x8] sm:$0xff]
      %v129 = vadd.f32 %v127, %v128
      %130 = vadd.xlane.f32.xlu0 %v129
      %v131 = vpop.xlane.xlu0 %130
      %v132 = vrot.slane %v131, 4
      %v133 = vadd.f32 %v131, %v132
      %v134 = vrot.slane %v133, 2
      %v135 = vadd.f32 %v133, %v134
      %v136 = vrot.slane %v135, 1
      %v137 = vadd.f32 %v135, %v136
      %s138 = vtos %v137
      %s139 = ssub.f32 0.0, %s138
      %s140 = scalar_lea.smem [#allocation8], 0
      %141 = sst [smem:[%s140]] %s139
    $region25: #{tpu_custom_call.1} parent=1 // pred_fallthru
      _
    // Predicated region
    $region26: #{tpu_custom_call.1} parent=1 // pred_check
      _
    $region27: #{tpu_custom_call.1} parent=1 // pred_check_branch
      %143 = sbr.rel (0) target = $region29
    $region28: #{tpu_custom_call.1} parent=1 // pred_region
      %145 = vsyncadd [#allocation5], 0
      %s147 = sshll.u32 %s2, 4
      %s148 = int_to_ptr.hbm [resolvable:$true] %s147
      %150 = dma.smem_to_hbm [#allocation8], 16, %s148, [#allocation5]
    $region29: #{tpu_custom_call.1} parent=1 // pred_fallthru
      _
    // Predicated region
    $region30: #{tpu_custom_call.1} parent=1 // pred_check
      _
    $region31: #{tpu_custom_call.1} parent=1 // pred_check_branch
      %152 = sbr.rel (0) target = $region33
    $region32: #{tpu_custom_call.1} parent=1 // pred_region
      %154 = dma.done [#allocation5], 16
    $region33: #{tpu_custom_call.1} parent=1 // pred_fallthru
      _
    %155 = sfence
    %156 = vsyncpa [#allocation4], 1
    %157 = vsyncpa [#allocation7], 1
    %158 = vsyncpa [#allocation5], 1

</llo_original>
